<compile_context>
chip_gen: v7x
topology: tpu7x:2x2x1
jax: 0.10.0
libtpu: 0.0.40
codegen_flags: <defaults>
</compile_context>

<pallas_src>
import functools

import jax
import jax.numpy as jnp
from jax.experimental import pallas as pl
from jax.experimental.pallas import tpu as pltpu


# --------------------------------------------------------------------------
# LinearScheduler equivalent (pure-JAX parameter setup -- glue, not hot path)
# --------------------------------------------------------------------------
def make_linear_scheduler(time_steps=100, beta_start=1e-4, beta_end=2e-2):
    betas = jnp.linspace(beta_start, beta_end, time_steps, dtype=jnp.float32)
    alphas = 1.0 - betas
    alphas_cumprod = jnp.cumprod(alphas)
    return {
        "time_steps": time_steps,
        "alpha_cumprod_sqrt": jnp.sqrt(alphas_cumprod),
        "one_minus_alphas_cumprod_sqrt": jnp.sqrt(1.0 - alphas_cumprod),
    }


def _default_silu_dtype():
    """bf16 SiLU on chips with bf16 VPU/EUP (v6e/v7x); f32 on v5e."""
    try:
        kind = jax.devices()[0].device_kind.lower()
        if "v5 lite" in kind or "v5e" in kind or "v5lite" in kind:
            return jnp.float32
    except Exception:
        pass
    return jnp.bfloat16


def _pick_pixel_tile(n, c, hid, vmem_budget_bytes=12 * 1024 * 1024, cap=32768):
    """Largest pixel chunk TN such that
         (a) TN divides N,
         (b) TN is lane-aligned (multiple of 128) unless it is the full row,
         (c) the f32+bf16 hidden intermediate (Hid, TN) plus double-buffered
             input blocks stay under `vmem_budget_bytes`.
    The budget-derived cap (not the raw input block) is the binding limit,
    which protects v7x's smaller (64 MiB physical / 32 MiB scoped) VMEM.
    """
    # VMEM bytes per pixel of one tile:
    #   hidden  : (Hid, TN) f32 matmul output + bf16 copy   -> hid * (4 + 2)
    #   inputs  : img f32 + noise bf16, double-buffered      -> 2 * c * (4 + 2)
    bytes_per_pixel = hid * 6 + 2 * c * 6
    hard_cap = max(128, (vmem_budget_bytes // bytes_per_pixel) // 128 * 128)
    cap = min(cap, hard_cap)
    if n <= cap:
        return n  # full row: any width is a legal (full-dim) block
    for tn in range(cap, 127, -128):
        if n % tn == 0:
            return tn
    raise ValueError(
        f"pixel count {n} has no lane-aligned divisor <= {cap}; pad H*W to a "
        f"multiple of 128 or reduce the hidden width so a tile fits VMEM.")


# --------------------------------------------------------------------------
# Fused kernel.  Grid = (B, n_pixel_chunks); chunk axis is a reduction into a
# per-sample resident accumulator (written to HBM once per sample).
#   x_t  = (img*2-1)*sqrt(ac_t) + noise*sqrt(1-ac_t)           (VPU, f32)
#   h^T  = SiLU(W1^T @ x_t^T + (b1+temb_b))   -> (Hid, TN)     (MXU bf16 + EUP)
#   y^T  = W2^T @ h^T + b2                    -> (C,  TN)      (MXU bf16)
#   acc += sum((y - noise)^2)                                  (f32)
# --------------------------------------------------------------------------
def _fused_fwd_kernel(a_sm, b_sm, img_ref, noise_ref, bias1_ref,
                      w1t_ref, w2t_ref, b2_ref, acc_ref,
                      *, norm_scale, norm_shift, silu_dtype):
    b = pl.program_id(0)
    n = pl.program_id(1)

    @pl.when(n == 0)
    def _():
        acc_ref[...] = jnp.zeros_like(acc_ref)

    a = a_sm[b]                    # sqrt(alpha_cumprod[t_b])
    s = b_sm[b]                    # sqrt(1 - alpha_cumprod[t_b])

    # storage dtypes (img f32, noise bf16) -> f32 compute for the mix
    x0 = img_ref[0].astype(jnp.float32) * norm_scale + norm_shift   # (C, TN)
    nz = noise_ref[0].astype(jnp.float32)                           # (C, TN)
    x_t = x0 * a + nz * s                                           # (C, TN)

    # transposed 1x1-conv matmuls, bf16 MXU operands, f32 accumulation
    h = jnp.dot(w1t_ref[...], x_t.astype(jnp.bfloat16),
                preferred_element_type=jnp.float32)                 # (Hid, TN)
    h = h + bias1_ref[0]                                            # + (Hid, 1)
    h = h.astype(silu_dtype)
    h = h * jax.nn.sigmoid(h)                                       # SiLU
    y = jnp.dot(w2t_ref[...], h.astype(jnp.bfloat16),
                preferred_element_type=jnp.float32)                 # (C, TN)
    y = y + b2_ref[...]                                             # + (C, 1)

    d = y - nz
    acc_ref[...] = acc_ref[...] + jnp.sum(d * d)   # resident per-sample SSE


def fused_diffusion_loss(img_bcn, noise_bcn, sqrt_ac_t, sqrt_1mac_t,
                         bias1_eff, w1t, w2t, b2, *, auto_normalize=True,
                         silu_dtype=None):
    B, C, N = img_bcn.shape
    Hid = w1t.shape[0]
    tn = _pick_pixel_tile(N, C, Hid)
    n_chunks = N // tn
    ns, nsh = (2.0, -1.0) if auto_normalize else (1.0, 0.0)
    silu_dtype = _default_silu_dtype() if silu_dtype is None else silu_dtype
    kernel = functools.partial(_fused_fwd_kernel, norm_scale=ns,
                               norm_shift=nsh, silu_dtype=silu_dtype)

    partials = pl.pallas_call(
        kernel,
        out_shape=jax.ShapeDtypeStruct((B, 8, 128), jnp.float32),
        grid=(B, n_chunks),
        in_specs=[
            pl.BlockSpec(memory_space=pltpu.MemorySpace.SMEM),  # sqrt_ac_t  (B,)
            pl.BlockSpec(memory_space=pltpu.MemorySpace.SMEM),  # sqrt_1m_t  (B,)
            pl.BlockSpec((1, C, tn), lambda b, n: (b, 0, n)),   # img   (f32)
            pl.BlockSpec((1, C, tn), lambda b, n: (b, 0, n)),   # noise (bf16)
            pl.BlockSpec((1, Hid, 1), lambda b, n: (b, 0, 0)),  # b1 + temb_b
            pl.BlockSpec((Hid, C), lambda b, n: (0, 0)),        # W1^T (bf16)
            pl.BlockSpec((C, Hid), lambda b, n: (0, 0)),        # W2^T (bf16)
            pl.BlockSpec((C, 1), lambda b, n: (0, 0)),          # b2   (f32)
        ],
        # resident per-sample accumulator: same block across the chunk axis
        out_specs=pl.BlockSpec((1, 8, 128), lambda b, n: (b, 0, 0)),
        compiler_params=pltpu.CompilerParams(
            dimension_semantics=("parallel", "arbitrary"),
            vmem_limit_bytes=32 * 1024 * 1024),
    )(sqrt_ac_t, sqrt_1mac_t, img_bcn, noise_bcn, bias1_eff, w1t, w2t, b2)

    # Tiny final reduction over B per-sample sums (glue).  Every sample has
    # the same element count (C*N), so mean-of-per-sample-means == global mean.
    total_sse = jnp.sum(partials[:, 0, 0])
    return total_sse / float(B * C * N)


# --------------------------------------------------------------------------
# GaussianDiffusion (forward pass only)
# --------------------------------------------------------------------------
class GaussianDiffusionPallas:
    def __init__(self, image_size, channels, hidden=32, time_steps=100,
                 auto_normalize=True, noise_dtype=jnp.bfloat16, key=None):
        self.image_size = image_size
        self.channels = channels
        self.hidden = hidden
        self.auto_normalize = auto_normalize
        self.noise_dtype = noise_dtype
        self.scheduler = make_linear_scheduler(time_steps)

        key = jax.random.PRNGKey(42) if key is None else key
        k = jax.random.split(key, 4)
        h, c = hidden, channels
        # Deterministic synthetic denoiser parameters, stored pre-transposed
        # (w1t = W1.T, w2t = W2.T) so the kernel matmuls are lane-dense, and
        # in bf16 so both jnp.dot's feed the MXU bf16 operands.
        self.params = {
            "wt": 0.1 * jax.random.normal(k[0], (h, h), jnp.float32),
            "bt": jnp.zeros((h,), jnp.float32),
            "w1t": (0.1 * jax.random.normal(k[1], (h, c), jnp.float32)
                    ).astype(jnp.bfloat16),
            "b1": jnp.zeros((h,), jnp.float32),
            "w2t": (0.1 * jax.random.normal(k[2], (c, h), jnp.float32)
                    ).astype(jnp.bfloat16),
            "b2": jnp.zeros((c, 1), jnp.float32),
        }
        assert self.params["w1t"].shape[1] == self.params["w2t"].shape[0], \
            "Error: Mismatch in model input/output channels."

    def _time_embedding(self, t):
        # sinusoidal embedding + tiny MLP (glue; (B, hidden) only)
        h = self.hidden
        half = h // 2
        freqs = jnp.exp(-jnp.log(10000.0)
                        * jnp.arange(half, dtype=jnp.float32) / float(half))
        args = t.astype(jnp.float32)[:, None] * freqs[None, :]
        emb = jnp.concatenate([jnp.sin(args), jnp.cos(args)], axis=-1)  # (B, h)
        temb = emb @ self.params["wt"] + self.params["bt"]
        return temb * jax.nn.sigmoid(temb)                              # SiLU

    def forward(self, img_nchw, key):
        B, C, H, W = img_nchw.shape
        assert H == self.image_size and W == self.image_size, \
            f"Error:image size dismatch {self.image_size}"
        assert C == self.channels
        N = H * W

        # NCHW flattened -> (B, C, H*W): pixels on lanes.  No dtype cast here
        # (an extra astype would be a full HBM round trip); cast in-kernel.
        img_bcn = img_nchw.reshape(B, C, N)

        k_noise, k_t = jax.random.split(key)
        # noise is *generated* in its storage dtype (bf16) so the producer
        # already emits the compact form; the same noise is used for x_t and
        # as the MSE target, so this is self-consistent (bf16-level numerics).
        noise_bcn = jax.random.normal(k_noise, (B, C, N), self.noise_dtype)
        t = jax.random.randint(k_t, (B,), 0, self.scheduler["time_steps"])

        a_t = jnp.take(self.scheduler["alpha_cumprod_sqrt"], t)
        b_t = jnp.take(self.scheduler["one_minus_alphas_cumprod_sqrt"], t)

        # Hoisted bias combine: b1 + per-sample time embedding -> (B, Hid, 1)
        temb = self._time_embedding(t)
        bias1_eff = (temb + self.params["b1"]).reshape(B, self.hidden, 1)

        return fused_diffusion_loss(
            img_bcn, noise_bcn, a_t, b_t, bias1_eff,
            self.params["w1t"], self.params["w2t"], self.params["b2"],
            auto_normalize=self.auto_normalize)


if __name__ == "__main__":
    B, C, IMG, HID = 2, 4, 16, 32
    key = jax.random.PRNGKey(0)
    k_img, k_fwd = jax.random.split(key)

    # images in [0, 1], NCHW like the PyTorch module expects
    img = jax.random.uniform(k_img, (B, C, IMG, IMG), jnp.float32)

    diffusion = GaussianDiffusionPallas(image_size=IMG, channels=C, hidden=HID,
                                        time_steps=100, auto_normalize=True,
                                        key=jax.random.PRNGKey(42))
    loss = diffusion.forward(img, k_fwd)
    loss = jax.block_until_ready(loss)
    assert loss.shape == () and jnp.isfinite(loss)
    print("KERNEL_OK")
</pallas_src>

<mosaic_0001>
module attributes {stable_mosaic.version = 11 : i64} {
  func.func @_fused_fwd_kernel(%arg0: i32, %arg1: i32, %arg2: memref<2xf32, #tpu.memory_space<smem>>, %arg3: memref<2xf32, #tpu.memory_space<smem>>, %arg4: memref<1x4x256xf32, #tpu.memory_space<vmem>>, %arg5: memref<1x4x256xbf16, #tpu.memory_space<vmem>>, %arg6: memref<1x32x1xf32, #tpu.memory_space<vmem>>, %arg7: memref<32x4xbf16, #tpu.memory_space<vmem>>, %arg8: memref<4x32xbf16, #tpu.memory_space<vmem>>, %arg9: memref<4x1xf32, #tpu.memory_space<vmem>>, %arg10: memref<1x8x128xf32, #tpu.memory_space<vmem>>) attributes {dimension_semantics = [#tpu.dimension_semantics<parallel>, #tpu.dimension_semantics<arbitrary>], iteration_bounds = array<i64: 2, 1>, scalar_prefetch = 0 : i64, scratch_operands = 0 : i64, tpu.core_type = #tpu.core_type<tc>, window_params = [{transform_indices = @transform_0, window_bounds = array<i64: 2>}, {transform_indices = @transform_1, window_bounds = array<i64: 2>}, {transform_indices = @transform_2, window_bounds = array<i64: 1, 4, 256>}, {transform_indices = @transform_3, window_bounds = array<i64: 1, 4, 256>}, {transform_indices = @transform_4, window_bounds = array<i64: 1, 32, 1>}, {pipeline_mode = #tpu.pipeline_mode<synchronous>, transform_indices = @transform_5, window_bounds = array<i64: 32, 4>}, {pipeline_mode = #tpu.pipeline_mode<synchronous>, transform_indices = @transform_6, window_bounds = array<i64: 4, 32>}, {pipeline_mode = #tpu.pipeline_mode<synchronous>, transform_indices = @transform_7, window_bounds = array<i64: 4, 1>}, {transform_indices = @transform_8, window_bounds = array<i64: 1, 8, 128>}]} {
    %c0_i32 = arith.constant 0 : i32
    %0 = arith.cmpi eq, %arg1, %c0_i32 : i32
    %1 = arith.extui %0 : i1 to i32
    %c0_i32_0 = arith.constant 0 : i32
    %2 = arith.cmpi ne, %1, %c0_i32_0 : i32
    scf.if %2 {
      %cst_26 = arith.constant 0.000000e+00 : f32
      %50 = vector.broadcast %cst_26 : f32 to vector<1x8x128xf32>
      %c0_27 = arith.constant 0 : index
      %c0_28 = arith.constant 0 : index
      %c0_29 = arith.constant 0 : index
      %51 = vector.load %arg10[%c0_27, %c0_28, %c0_29] : memref<1x8x128xf32, #tpu.memory_space<vmem>>, vector<1x8x128xf32>
      tpu.vector_store %arg10[%c0_27, %c0_28, %c0_29], %50 {strides = array<i32>} : memref<1x8x128xf32, #tpu.memory_space<vmem>>, vector<1x8x128xf32>,
    } else {
    }
    %3 = arith.index_cast %arg0 : i32 to index
    %4 = memref.load %arg2[%3] : memref<2xf32, #tpu.memory_space<smem>>
    %5 = arith.index_cast %arg0 : i32 to index
    %6 = memref.load %arg3[%5] : memref<2xf32, #tpu.memory_space<smem>>
    %c0 = arith.constant 0 : index
    %c0_1 = arith.constant 0 : index
    %c0_2 = arith.constant 0 : index
    %7 = vector.load %arg4[%c0, %c0_1, %c0_2] : memref<1x4x256xf32, #tpu.memory_space<vmem>>, vector<1x4x256xf32>
    %8 = vector.shape_cast %7 : vector<1x4x256xf32> to vector<4x256xf32>
    %cst = arith.constant 2.000000e+00 : f32
    %9 = vector.broadcast %cst : f32 to vector<4x256xf32>
    %10 = arith.mulf %8, %9 : vector<4x256xf32>
    %cst_3 = arith.constant -1.000000e+00 : f32
    %11 = vector.broadcast %cst_3 : f32 to vector<4x256xf32>
    %12 = arith.addf %10, %11 : vector<4x256xf32>
    %c0_4 = arith.constant 0 : index
    %c0_5 = arith.constant 0 : index
    %c0_6 = arith.constant 0 : index
    %13 = vector.load %arg5[%c0_4, %c0_5, %c0_6] : memref<1x4x256xbf16, #tpu.memory_space<vmem>>, vector<1x4x256xbf16>
    %14 = vector.shape_cast %13 : vector<1x4x256xbf16> to vector<4x256xbf16>
    %15 = arith.extf %14 : vector<4x256xbf16> to vector<4x256xf32>
    %16 = vector.broadcast %4 : f32 to vector<4x256xf32>
    %17 = arith.mulf %12, %16 : vector<4x256xf32>
    %18 = vector.broadcast %6 : f32 to vector<4x256xf32>
    %19 = arith.mulf %15, %18 : vector<4x256xf32>
    %20 = arith.addf %17, %19 : vector<4x256xf32>
    %c0_7 = arith.constant 0 : index
    %c0_8 = arith.constant 0 : index
    %21 = vector.load %arg7[%c0_7, %c0_8] : memref<32x4xbf16, #tpu.memory_space<vmem>>, vector<32x4xbf16>
    %22 = arith.truncf %20 : vector<4x256xf32> to vector<4x256xbf16>
    %cst_9 = arith.constant dense<0.000000e+00> : vector<32x256xf32>
    %23 = tpu.matmul %21, %22, %cst_9 {dimension_numbers = #tpu.dot_dimension_numbers<[1], [0], [0], [1], [0, 0, 1, 1], [], []>} : vector<32x4xbf16>, vector<4x256xbf16>, vector<32x256xf32> -> vector<32x256xf32>
    %c0_10 = arith.constant 0 : index
    %c0_11 = arith.constant 0 : index
    %c0_12 = arith.constant 0 : index
    %24 = vector.load %arg6[%c0_10, %c0_11, %c0_12] : memref<1x32x1xf32, #tpu.memory_space<vmem>>, vector<1x32x1xf32>
    %25 = vector.shape_cast %24 : vector<1x32x1xf32> to vector<32x1xf32>
    %26 = vector.broadcast %25 : vector<32x1xf32> to vector<32x256xf32>
    %27 = arith.addf %23, %26 : vector<32x256xf32>
    %28 = arith.truncf %27 : vector<32x256xf32> to vector<32x256xbf16>
    %29 = arith.negf %28 : vector<32x256xbf16>
    %30 = math.exp %29 : vector<32x256xbf16>
    %cst_13 = arith.constant 1.000000e+00 : bf16
    %31 = vector.broadcast %cst_13 : bf16 to vector<32x256xbf16>
    %32 = arith.addf %31, %30 : vector<32x256xbf16>
    %33 = arith.divf %31, %32 : vector<32x256xbf16>
    %34 = arith.mulf %28, %33 : vector<32x256xbf16>
    %c0_14 = arith.constant 0 : index
    %c0_15 = arith.constant 0 : index
    %35 = vector.load %arg8[%c0_14, %c0_15] : memref<4x32xbf16, #tpu.memory_space<vmem>>, vector<4x32xbf16>
    %cst_16 = arith.constant dense<0.000000e+00> : vector<4x256xf32>
    %36 = tpu.matmul %35, %34, %cst_16 {dimension_numbers = #tpu.dot_dimension_numbers<[1], [0], [0], [1], [0, 0, 1, 1], [], []>} : vector<4x32xbf16>, vector<32x256xbf16>, vector<4x256xf32> -> vector<4x256xf32>
    %c0_17 = arith.constant 0 : index
    %c0_18 = arith.constant 0 : index
    %37 = vector.load %arg9[%c0_17, %c0_18] : memref<4x1xf32, #tpu.memory_space<vmem>>, vector<4x1xf32>
    %38 = vector.broadcast %37 : vector<4x1xf32> to vector<4x256xf32>
    %39 = arith.addf %36, %38 : vector<4x256xf32>
    %40 = arith.subf %39, %15 : vector<4x256xf32>
    %c0_19 = arith.constant 0 : index
    %c0_20 = arith.constant 0 : index
    %c0_21 = arith.constant 0 : index
    %41 = vector.load %arg10[%c0_19, %c0_20, %c0_21] : memref<1x8x128xf32, #tpu.memory_space<vmem>>, vector<1x8x128xf32>
    %42 = arith.mulf %40, %40 : vector<4x256xf32>
    %43 = vector.shape_cast %42 : vector<4x256xf32> to vector<1x4x256xf32>
    %cst_22 = arith.constant dense<0.000000e+00> : vector<1xf32>
    %44 = vector.multi_reduction <add>, %43, %cst_22 [1, 2] : vector<1x4x256xf32> to vector<1xf32>
    %45 = vector.shape_cast %44 : vector<1xf32> to vector<1x1x1xf32>
    %46 = vector.extract %45[0, 0, 0] : f32 from vector<1x1x1xf32>
    %47 = vector.broadcast %46 : f32 to vector<1x8x128xf32>
    %48 = arith.addf %41, %47 : vector<1x8x128xf32>
    %c0_23 = arith.constant 0 : index
    %c0_24 = arith.constant 0 : index
    %c0_25 = arith.constant 0 : index
    %49 = vector.load %arg10[%c0_23, %c0_24, %c0_25] : memref<1x8x128xf32, #tpu.memory_space<vmem>>, vector<1x8x128xf32>
    tpu.vector_store %arg10[%c0_23, %c0_24, %c0_25], %48 {strides = array<i32>} : memref<1x8x128xf32, #tpu.memory_space<vmem>>, vector<1x8x128xf32>,
    return
  }
  func.func @transform_0(%arg0: i32, %arg1: i32) -> i32 {
    %c0_i32 = arith.constant 0 : i32
    %c0_i32_0 = arith.constant 0 : i32
    return %c0_i32 : i32
  }
  func.func @transform_1(%arg0: i32, %arg1: i32) -> i32 {
    %c0_i32 = arith.constant 0 : i32
    %c0_i32_0 = arith.constant 0 : i32
    return %c0_i32 : i32
  }
  func.func @transform_2(%arg0: i32, %arg1: i32) -> (i32, i32, i32) {
    %c0_i32 = arith.constant 0 : i32
    %c0_i32_0 = arith.constant 0 : i32
    return %arg0, %c0_i32, %arg1 : i32, i32, i32
  }
  func.func @transform_3(%arg0: i32, %arg1: i32) -> (i32, i32, i32) {
    %c0_i32 = arith.constant 0 : i32
    %c0_i32_0 = arith.constant 0 : i32
    return %arg0, %c0_i32, %arg1 : i32, i32, i32
  }
  func.func @transform_4(%arg0: i32, %arg1: i32) -> (i32, i32, i32) {
    %c0_i32 = arith.constant 0 : i32
    %c0_i32_0 = arith.constant 0 : i32
    %c0_i32_1 = arith.constant 0 : i32
    return %arg0, %c0_i32, %c0_i32_0 : i32, i32, i32
  }
  func.func @transform_5(%arg0: i32, %arg1: i32) -> (i32, i32) {
    %c0_i32 = arith.constant 0 : i32
    %c0_i32_0 = arith.constant 0 : i32
    %c0_i32_1 = arith.constant 0 : i32
    return %c0_i32, %c0_i32_0 : i32, i32
  }
  func.func @transform_6(%arg0: i32, %arg1: i32) -> (i32, i32) {
    %c0_i32 = arith.constant 0 : i32
    %c0_i32_0 = arith.constant 0 : i32
    %c0_i32_1 = arith.constant 0 : i32
    return %c0_i32, %c0_i32_0 : i32, i32
  }
  func.func @transform_7(%arg0: i32, %arg1: i32) -> (i32, i32) {
    %c0_i32 = arith.constant 0 : i32
    %c0_i32_0 = arith.constant 0 : i32
    %c0_i32_1 = arith.constant 0 : i32
    return %c0_i32, %c0_i32_0 : i32, i32
  }
  func.func @transform_8(%arg0: i32, %arg1: i32) -> (i32, i32, i32) {
    %c0_i32 = arith.constant 0 : i32
    %c0_i32_0 = arith.constant 0 : i32
    %c0_i32_1 = arith.constant 0 : i32
    return %arg0, %c0_i32, %c0_i32_0 : i32, i32, i32
  }
}

</mosaic_0001>

<llo_original>
// kernel: tpu_custom_call.1
$region0: #{tpu_custom_call.1}
  #allocation0 [shape = 'u32[]', space=smem, size = 0x4, offset = 0x4, fixed_abs, tag = 'smem constant byte address 0x4 - core index']
  #allocation1 [shape = 'u32[144,128]{1,0:T(1,128)}', space=vmem, size = 0x12000, scoped, tag = 'internal scratch']
  %s0 = inlined_call_operand.vmem [shape: f32[2], index: 0, kind: input, shape index: {}]
  %s1 = inlined_call_operand.vmem [shape: f32[2], index: 1, kind: input, shape index: {}]
  %s2 = inlined_call_operand.vmem [shape: f32[2,4,256], index: 2, kind: input, shape index: {}]
  %s3 = inlined_call_operand.vmem [shape: bf16[2,4,256], index: 3, kind: input, shape index: {}]
  %s4 = inlined_call_operand.vmem [shape: f32[2,32,1], index: 4, kind: input, shape index: {}]
  %s5 = inlined_call_operand.vmem [shape: bf16[32,4], index: 5, kind: input, shape index: {}]
  %s6 = inlined_call_operand.vmem [shape: bf16[4,32], index: 6, kind: input, shape index: {}]
  %s7 = inlined_call_operand.vmem [shape: f32[4,1], index: 7, kind: input, shape index: {}]
  %s8 = inlined_call_operand.hbm [shape: f32[2,8,128], index: 8, kind: output, shape index: {}]
  %s9 = sld [smem:[#allocation0]]
  $region77: #{tpu_custom_call.1} parent=0
    _
  %s11 = ssub.s32 1, %s9
  %s12 = scalar_select 0, %s11, %s9
  $region1: #{tpu_custom_call.1} parent=0
    #allocation2 [shape = 'u8[512]{0}', space=smem, size = 0x200, scoped, tag = 'input window, operand 0, single buffered']
    #allocation3 [shape = 's32[2]{0}', space=sflag, size = 0x8, scoped, tag = 'scoped memory for tpu_custom_call.1']
    #allocation4 [shape = 's32[2]{0}', space=sflag, size = 0x8, scoped, tag = 'scoped memory for tpu_custom_call.1']
    #allocation5 [shape = 'u8[512]{0}', space=smem, size = 0x200, scoped, tag = 'input window, operand 1, single buffered']
    #allocation6 [shape = 's32[1]{0}', space=sflag, size = 0x4, scoped, tag = 'scoped memory for tpu_custom_call.1']
    #allocation7 [shape = 'u8[8192]{0}', space=vmem, size = 0x2000, scoped, tag = 'output window, operand 0']
    %13 = vsyncpa [#allocation4], 0
    %14 = vsyncpa [#allocation6], 0
    %15 = vsyncpa [#allocation3], 0
    %s16 = scalar_lea.sflag [#allocation3], 1
    %17 = vsyncpa %s16, 0
    loop: start=0, step=1, limit=4
    $region2: #{tpu_custom_call.1} parent=1 // loop_pre_header
      _
    $region3: #{tpu_custom_call.1} parent=1 // loop_header
      %s19 = sphi 0, %s23
      %p20 = scmp.ge.s32.totalorder %s19, 4
      %s26 = sphi 0, %s38
      %s27 = sphi 0, %s34
      %s28 = sphi 0, %s26
      %s29 = sphi 0, %s27
      %s30 = sphi 0, %s28
      %s31 = sphi 0, %s29
      %s39 = sphi 0, %s39
      %s41 = sphi 0, %s39
      %s42 = sphi 0, %s41
      %s56 = sphi 0, %s42
      %s60 = sphi 0, %s60
      %s62 = sphi 0, %s60
      %s63 = sphi 0, %s62
      %s77 = sphi 0, %s63
      %s85 = sphi 0, %s87
      %s88 = sphi 0, %s85
      %s89 = sphi 0, %s88
      %s105 = sphi 0, %s89
      %s113 = sphi 0, %s115
      %s116 = sphi 0, %s113
      %s117 = sphi 0, %s116
      %s133 = sphi 0, %s117
      %s139 = sphi 0, %s141
      %s142 = sphi 0, %s139
      %s143 = sphi 0, %s142
      %s159 = sphi 0, %s143
      %s163 = sphi 0, %s163
      %s165 = sphi 0, %s163
      %s166 = sphi 0, %s165
      %s180 = sphi 0, %s166
      %s184 = sphi 0, %s184
      %s186 = sphi 0, %s184
      %s187 = sphi 0, %s186
      %s201 = sphi 0, %s187
      %s205 = sphi 0, %s205
      %s207 = sphi 0, %s205
      %s208 = sphi 0, %s207
      %s222 = sphi 0, %s208
      %s228 = sphi 0, %s230
      %s231 = sphi 0, %s228
      %s232 = sphi 0, %s231
      %s248 = sphi 0, %s232
    $region4: #{tpu_custom_call.1} parent=1 // loop_header_branch
      %22 = sbr.rel (%p20) target = $region8
    $region5: #{tpu_custom_call.1} parent=1 // loop_body
      %s24 = ssub.s32 %s19, 1
      %s25 = ssub.s32 %s19, 2
      %s32 = sadd.s32 1, %s27
      %p33 = scmp.ge.s32.totalorder %s32, 1
      %s34 = scalar_select %p33, 0, %s32
      %s35 = sadd.s32 1, %s26
      %s36 = scalar_select %p33, %s35, %s26
      %p37 = scmp.ge.s32.totalorder %s36, 2
      %s38 = scalar_select %p37, 0, %s36
      %s40 = sadd.s32 %s39, 1
      %p43 = scmp.eq.s32.totalorder %s19, 1
      %p44 = scmp.ne.s32.totalorder %s39, %s41
      %p45 = scmp.eq.s32.totalorder %s19, 0
      %p46 = por %p44, %p45
      %p47 = scmp.ne.s32.totalorder %s39, %s41
      %p48 = scmp.eq.s32.totalorder %s24, 1
      %p49 = por %p47, %p48
      %p50 = scmp.ne.s32.totalorder %s41, %s42
      %p51 = scmp.eq.s32.totalorder %s24, 0
      %p52 = por %p50, %p51
      %p53 = scmp.ne.s32.totalorder %s41, %s42
      %p54 = scmp.eq.s32.totalorder %s25, 1
      %p55 = por %p53, %p54
      %p57 = scmp.ne.s32.totalorder %s42, %s56
      %p58 = scmp.eq.s32.totalorder %s25, 0
      %p59 = por %p57, %p58
      %s61 = sadd.s32 %s60, 1
      %p64 = scmp.eq.s32.totalorder %s19, 1
      %p65 = scmp.ne.s32.totalorder %s60, %s62
      %p66 = scmp.eq.s32.totalorder %s19, 0
      %p67 = por %p65, %p66
      %p68 = scmp.ne.s32.totalorder %s60, %s62
      %p69 = scmp.eq.s32.totalorder %s24, 1
      %p70 = por %p68, %p69
      %p71 = scmp.ne.s32.totalorder %s62, %s63
      %p72 = scmp.eq.s32.totalorder %s24, 0
      %p73 = por %p71, %p72
      %p74 = scmp.ne.s32.totalorder %s62, %s63
      %p75 = scmp.eq.s32.totalorder %s25, 1
      %p76 = por %p74, %p75
      %p78 = scmp.ne.s32.totalorder %s63, %s77
      %p79 = scmp.eq.s32.totalorder %s25, 0
      %p80 = por %p78, %p79
      %s81 = ssub.s32 %s26, %s38
      %s82 = ssub.s32 %s27, %s34
      %s83 = sor.u32 %s81, %s82
      %p84 = scmp.eq.s32.totalorder %s83, 0
      %s86 = sadd.s32 %s85, 1
      %s87 = scalar_select %p84, %s85, %s86
      %p90 = pneg %p84
      %p91 = scmp.eq.s32.totalorder %s19, 1
      %p92 = por %p90, %p91
      %p93 = scmp.ne.s32.totalorder %s85, %s88
      %p94 = scmp.eq.s32.totalorder %s19, 0
      %p95 = por %p93, %p94
      %p96 = scmp.ne.s32.totalorder %s85, %s88
      %p97 = scmp.eq.s32.totalorder %s24, 1
      %p98 = por %p96, %p97
      %p99 = scmp.ne.s32.totalorder %s88, %s89
      %p100 = scmp.eq.s32.totalorder %s24, 0
      %p101 = por %p99, %p100
      %p102 = scmp.ne.s32.totalorder %s88, %s89
      %p103 = scmp.eq.s32.totalorder %s25, 1
      %p104 = por %p102, %p103
      %p106 = scmp.ne.s32.totalorder %s89, %s105
      %p107 = scmp.eq.s32.totalorder %s25, 0
      %p108 = por %p106, %p107
      %s109 = ssub.s32 %s26, %s38
      %s110 = ssub.s32 %s27, %s34
      %s111 = sor.u32 %s109, %s110
      %p112 = scmp.eq.s32.totalorder %s111, 0
      %s114 = sadd.s32 %s113, 1
      %s115 = scalar_select %p112, %s113, %s114
      %p118 = pneg %p112
      %p119 = scmp.eq.s32.totalorder %s19, 1
      %p120 = por %p118, %p119
      %p121 = scmp.ne.s32.totalorder %s113, %s116
      %p122 = scmp.eq.s32.totalorder %s19, 0
      %p123 = por %p121, %p122
      %p124 = scmp.ne.s32.totalorder %s113, %s116
      %p125 = scmp.eq.s32.totalorder %s24, 1
      %p126 = por %p124, %p125
      %p127 = scmp.ne.s32.totalorder %s116, %s117
      %p128 = scmp.eq.s32.totalorder %s24, 0
      %p129 = por %p127, %p128
      %p130 = scmp.ne.s32.totalorder %s116, %s117
      %p131 = scmp.eq.s32.totalorder %s25, 1
      %p132 = por %p130, %p131
      %p134 = scmp.ne.s32.totalorder %s117, %s133
      %p135 = scmp.eq.s32.totalorder %s25, 0
      %p136 = por %p134, %p135
      %s137 = ssub.s32 %s26, %s38
      %p138 = scmp.eq.s32.totalorder %s137, 0
      %s140 = sadd.s32 %s139, 1
      %s141 = scalar_select %p138, %s139, %s140
      %p144 = pneg %p138
      %p145 = scmp.eq.s32.totalorder %s19, 1
      %p146 = por %p144, %p145
      %p147 = scmp.ne.s32.totalorder %s139, %s142
      %p148 = scmp.eq.s32.totalorder %s19, 0
      %p149 = por %p147, %p148
      %p150 = scmp.ne.s32.totalorder %s139, %s142
      %p151 = scmp.eq.s32.totalorder %s24, 1
      %p152 = por %p150, %p151
      %p153 = scmp.ne.s32.totalorder %s142, %s143
      %p154 = scmp.eq.s32.totalorder %s24, 0
      %p155 = por %p153, %p154
      %p156 = scmp.ne.s32.totalorder %s142, %s143
      %p157 = scmp.eq.s32.totalorder %s25, 1
      %p158 = por %p156, %p157
      %p160 = scmp.ne.s32.totalorder %s143, %s159
      %p161 = scmp.eq.s32.totalorder %s25, 0
      %p162 = por %p160, %p161
      %s164 = sadd.s32 %s163, 1
      %p167 = scmp.eq.s32.totalorder %s19, 1
      %p168 = scmp.ne.s32.totalorder %s163, %s165
      %p169 = scmp.eq.s32.totalorder %s19, 0
      %p170 = por %p168, %p169
      %p171 = scmp.ne.s32.totalorder %s163, %s165
      %p172 = scmp.eq.s32.totalorder %s24, 1
      %p173 = por %p171, %p172
      %p174 = scmp.ne.s32.totalorder %s165, %s166
      %p175 = scmp.eq.s32.totalorder %s24, 0
      %p176 = por %p174, %p175
      %p177 = scmp.ne.s32.totalorder %s165, %s166
      %p178 = scmp.eq.s32.totalorder %s25, 1
      %p179 = por %p177, %p178
      %p181 = scmp.ne.s32.totalorder %s166, %s180
      %p182 = scmp.eq.s32.totalorder %s25, 0
      %p183 = por %p181, %p182
      %s185 = sadd.s32 %s184, 1
      %p188 = scmp.eq.s32.totalorder %s19, 1
      %p189 = scmp.ne.s32.totalorder %s184, %s186
      %p190 = scmp.eq.s32.totalorder %s19, 0
      %p191 = por %p189, %p190
      %p192 = scmp.ne.s32.totalorder %s184, %s186
      %p193 = scmp.eq.s32.totalorder %s24, 1
      %p194 = por %p192, %p193
      %p195 = scmp.ne.s32.totalorder %s186, %s187
      %p196 = scmp.eq.s32.totalorder %s24, 0
      %p197 = por %p195, %p196
      %p198 = scmp.ne.s32.totalorder %s186, %s187
      %p199 = scmp.eq.s32.totalorder %s25, 1
      %p200 = por %p198, %p199
      %p202 = scmp.ne.s32.totalorder %s187, %s201
      %p203 = scmp.eq.s32.totalorder %s25, 0
      %p204 = por %p202, %p203
      %s206 = sadd.s32 %s205, 1
      %p209 = scmp.eq.s32.totalorder %s19, 1
      %p210 = scmp.ne.s32.totalorder %s205, %s207
      %p211 = scmp.eq.s32.totalorder %s19, 0
      %p212 = por %p210, %p211
      %p213 = scmp.ne.s32.totalorder %s205, %s207
      %p214 = scmp.eq.s32.totalorder %s24, 1
      %p215 = por %p213, %p214
      %p216 = scmp.ne.s32.totalorder %s207, %s208
      %p217 = scmp.eq.s32.totalorder %s24, 0
      %p218 = por %p216, %p217
      %p219 = scmp.ne.s32.totalorder %s207, %s208
      %p220 = scmp.eq.s32.totalorder %s25, 1
      %p221 = por %p219, %p220
      %p223 = scmp.ne.s32.totalorder %s208, %s222
      %p224 = scmp.eq.s32.totalorder %s25, 0
      %p225 = por %p223, %p224
      %s226 = ssub.s32 %s26, %s38
      %p227 = scmp.eq.s32.totalorder %s226, 0
      %s229 = sadd.s32 %s228, 1
      %s230 = scalar_select %p227, %s228, %s229
      %p233 = pneg %p227
      %p234 = scmp.eq.s32.totalorder %s19, 1
      %p235 = por %p233, %p234
      %p236 = scmp.ne.s32.totalorder %s228, %s231
      %p237 = scmp.eq.s32.totalorder %s19, 0
      %p238 = por %p236, %p237
      %p239 = scmp.ne.s32.totalorder %s228, %s231
      %p240 = scmp.eq.s32.totalorder %s24, 1
      %p241 = por %p239, %p240
      %p242 = scmp.ne.s32.totalorder %s231, %s232
      %p243 = scmp.eq.s32.totalorder %s24, 0
      %p244 = por %p242, %p243
      %p245 = scmp.ne.s32.totalorder %s231, %s232
      %p246 = scmp.eq.s32.totalorder %s25, 1
      %p247 = por %p245, %p246
      %p249 = scmp.ne.s32.totalorder %s232, %s248
      %p250 = scmp.eq.s32.totalorder %s25, 0
      %p251 = por %p249, %p250
      %p252 = scmp.le.s32.totalorder 1, %s19
      %p253 = scmp.lt.s32.totalorder %s19, 3
      %p254 = pnand %p252, %p253
      %p255 = pneg %p254
      // Predicated region
      $region9: #{tpu_custom_call.1} parent=5 // pred_check
        _
      $region10: #{tpu_custom_call.1} parent=5 // pred_check_branch
        %257 = sbr.rel (%p254) target = $region12
      $region11: #{tpu_custom_call.1} parent=5 // pred_region
        %s258 = ssub.s32 %s19, 1
        // Predicated region
        $region13: #{tpu_custom_call.1} parent=11 // pred_check
          %p259 = pneg %p52
        $region14: #{tpu_custom_call.1} parent=11 // pred_check_branch
          %261 = sbr.rel (%p259) target = $region16
        $region15: #{tpu_custom_call.1} parent=11 // pred_region
          %s263 = ssub.s32 16, 16
          %264 = vsyncadd [#allocation4], %s263
          %s266 = sshll.u32 %s0, 4
          %s267 = int_to_ptr.vmem [resolvable:$true] %s266
          %269 = dma.vmem_to_smem %s267, 16, [#allocation2], [#allocation4]
        $region16: #{tpu_custom_call.1} parent=11 // pred_fallthru
          _
        // Predicated region
        $region17: #{tpu_custom_call.1} parent=11 // pred_check
          %p270 = pneg %p73
        $region18: #{tpu_custom_call.1} parent=11 // pred_check_branch
          %272 = sbr.rel (%p270) target = $region20
        $region19: #{tpu_custom_call.1} parent=11 // pred_region
          %s274 = ssub.s32 16, 16
          %275 = vsyncadd [#allocation6], %s274
          %s277 = sshll.u32 %s1, 4
          %s278 = int_to_ptr.vmem [resolvable:$true] %s277
          %280 = dma.vmem_to_smem %s278, 16, [#allocation5], [#allocation6]
        $region20: #{tpu_custom_call.1} parent=11 // pred_fallthru
          _
        // Predicated region
        $region21: #{tpu_custom_call.1} parent=11 // pred_check
          %p281 = pneg %p176
        $region22: #{tpu_custom_call.1} parent=11 // pred_check_branch
          %283 = sbr.rel (%p281) target = $region24
        $region23: #{tpu_custom_call.1} parent=11 // pred_region
          _
        $region24: #{tpu_custom_call.1} parent=11 // pred_fallthru
          _
        // Predicated region
        $region25: #{tpu_custom_call.1} parent=11 // pred_check
          %p284 = pneg %p197
        $region26: #{tpu_custom_call.1} parent=11 // pred_check_branch
          %286 = sbr.rel (%p284) target = $region28
        $region27: #{tpu_custom_call.1} parent=11 // pred_region
          _
        $region28: #{tpu_custom_call.1} parent=11 // pred_fallthru
          _
        // Predicated region
        $region29: #{tpu_custom_call.1} parent=11 // pred_check
          %p287 = pneg %p218
        $region30: #{tpu_custom_call.1} parent=11 // pred_check_branch
          %289 = sbr.rel (%p287) target = $region32
        $region31: #{tpu_custom_call.1} parent=11 // pred_region
          _
        $region32: #{tpu_custom_call.1} parent=11 // pred_fallthru
          _
      $region12: #{tpu_custom_call.1} parent=5 // pred_fallthru
        _
      %p290 = scmp.lt.s32.totalorder %s19, 2
      // Predicated region
      $region33: #{tpu_custom_call.1} parent=5 // pred_check
        %p291 = pneg %p290
      $region34: #{tpu_custom_call.1} parent=5 // pred_check_branch
        %293 = sbr.rel (%p291) target = $region36
      $region35: #{tpu_custom_call.1} parent=5 // pred_region
        // Predicated region
        $region37: #{tpu_custom_call.1} parent=35 // pred_check
          %p294 = pneg %p95
        $region38: #{tpu_custom_call.1} parent=35 // pred_check_branch
          %296 = sbr.rel (%p294) target = $region40
        $region39: #{tpu_custom_call.1} parent=35 // pred_region
          %s297 = smul.u32 2, %s27
          %p298 = scmp.lt.s32.totalorder %s26, 1
          %s299 = scalar_select %p298, %s26, 1
          %p300 = scmp.lt.s32.totalorder %s297, 1
          %s301 = scalar_select %p300, %s297, 1
          %s302 = smul.addr %s299, 2
          %s303 = sadd.s32 %s301, %s302
          %s304 = smul.addr %s303, 4
          %s305 = scalar_lea.vmem %s2, %s304
          %s306 = smul.u32 2, %s27
        $region40: #{tpu_custom_call.1} parent=35 // pred_fallthru
          _
        // Predicated region
        $region41: #{tpu_custom_call.1} parent=35 // pred_check
          %p307 = pneg %p123
        $region42: #{tpu_custom_call.1} parent=35 // pred_check_branch
          %309 = sbr.rel (%p307) target = $region44
        $region43: #{tpu_custom_call.1} parent=35 // pred_region
          %s310 = smul.u32 2, %s27
          %p311 = scmp.lt.s32.totalorder %s26, 1
          %s312 = scalar_select %p311, %s26, 1
          %p313 = scmp.lt.s32.totalorder %s310, 1
          %s314 = scalar_select %p313, %s310, 1
          %s315 = smul.addr %s312, 2
          %s316 = sadd.s32 %s314, %s315
          %s317 = smul.addr %s316, 2
          %s318 = scalar_lea.vmem %s3, %s317
          %s319 = smul.u32 2, %s27
        $region44: #{tpu_custom_call.1} parent=35 // pred_fallthru
          _
        // Predicated region
        $region45: #{tpu_custom_call.1} parent=35 // pred_check
          %p320 = pneg %p149
        $region46: #{tpu_custom_call.1} parent=35 // pred_check_branch
          %322 = sbr.rel (%p320) target = $region48
        $region47: #{tpu_custom_call.1} parent=35 // pred_region
          %p323 = scmp.lt.s32.totalorder %s26, 1
          %s324 = scalar_select %p323, %s26, 1
          %s325 = smul.addr %s324, 4
          %s326 = smul.addr %s325, 8
          %s327 = scalar_lea.vmem %s4, %s326
        $region48: #{tpu_custom_call.1} parent=35 // pred_fallthru
          _
      $region36: #{tpu_custom_call.1} parent=5 // pred_fallthru
        _
      %p328 = scmp.le.s32.totalorder 1, %s19
      %p329 = scmp.lt.s32.totalorder %s19, 3
      %p330 = pnand %p328, %p329
      %p331 = pneg %p330
      // Predicated region
      $region49: #{tpu_custom_call.1} parent=5 // pred_check
        _
      $region50: #{tpu_custom_call.1} parent=5 // pred_check_branch
        %333 = sbr.rel (%p330) target = $region52
      $region51: #{tpu_custom_call.1} parent=5 // pred_region
        %s334 = ssub.s32 %s19, 1
        // Predicated region
        $region53: #{tpu_custom_call.1} parent=51 // pred_check
          %p335 = pneg %p52
        $region54: #{tpu_custom_call.1} parent=51 // pred_check_branch
          %337 = sbr.rel (%p335) target = $region56
        $region55: #{tpu_custom_call.1} parent=51 // pred_region
          %338 = dma.done [#allocation4], 16
        $region56: #{tpu_custom_call.1} parent=51 // pred_fallthru
          _
        // Predicated region
        $region57: #{tpu_custom_call.1} parent=51 // pred_check
          %p339 = pneg %p73
        $region58: #{tpu_custom_call.1} parent=51 // pred_check_branch
          %341 = sbr.rel (%p339) target = $region60
        $region59: #{tpu_custom_call.1} parent=51 // pred_region
          %342 = dma.done [#allocation6], 16
        $region60: #{tpu_custom_call.1} parent=51 // pred_fallthru
          _
        %343 = sfence
        %p344 = pneg %p52
        %p345 = pneg %p49
        %p346 = pneg %p73
        %p347 = pneg %p70
        %s348 = smul.u32 2, %s29
        %p349 = scmp.lt.s32.totalorder %s28, 1
        %s350 = scalar_select %p349, %s28, 1
        %p351 = scmp.lt.s32.totalorder %s348, 1
        %s352 = scalar_select %p351, %s348, 1
        %s353 = smul.addr %s350, 2
        %s354 = sadd.s32 %s352, %s353
        %s355 = smul.addr %s354, 4
        %s356 = scalar_lea.vmem %s2, %s355
        %p357 = pneg %p101
        %p358 = pneg %p98
        %s359 = smul.u32 2, %s29
        %p360 = scmp.lt.s32.totalorder %s28, 1
        %s361 = scalar_select %p360, %s28, 1
        %p362 = scmp.lt.s32.totalorder %s359, 1
        %s363 = scalar_select %p362, %s359, 1
        %s364 = smul.addr %s361, 2
        %s365 = sadd.s32 %s363, %s364
        %s366 = smul.addr %s365, 2
        %s367 = scalar_lea.vmem %s3, %s366
        %p368 = pneg %p129
        %p369 = pneg %p126
        %p370 = scmp.lt.s32.totalorder %s28, 1
        %s371 = scalar_select %p370, %s28, 1
        %s372 = smul.addr %s371, 4
        %s373 = smul.addr %s372, 8
        %s374 = scalar_lea.vmem %s4, %s373
        %p375 = pneg %p155
        %p376 = pneg %p152
        %p377 = pneg %p176
        %p378 = pneg %p173
        %p379 = pneg %p197
        %p380 = pneg %p194
        %p381 = pneg %p218
        %p382 = pneg %p215
        %p383 = pneg %p244
        %p384 = pneg %p241
        %s385 = sand.u32 %s231, 1
        %s386 = scalar_lea.sflag [#allocation3], %s385
        %s387 = sand.u32 %s231, 1
        %s388 = smul.addr %s387, 8
        %s389 = scalar_lea.vmem [#allocation7], %s388
        %s390 = smul.u32 2, %s29
        %p391 = scmp.lt.s32.totalorder %s28, 1
        %s392 = scalar_select %p391, %s28, 1
        %p393 = scmp.lt.s32.totalorder %s390, 1
        %s394 = scalar_select %p393, %s390, 1
        %s395 = smul.addr %s392, 2
        %s396 = sadd.s32 %s394, %s395
        %s397 = smul.addr %s396, 4
        %s398 = scalar_lea.vmem %s2, %s397
        %s399 = smul.u32 2, %s29
        %s400 = smul.u32 2, %s29
        %p401 = scmp.lt.s32.totalorder %s28, 1
        %s402 = scalar_select %p401, %s28, 1
        %p403 = scmp.lt.s32.totalorder %s400, 1
        %s404 = scalar_select %p403, %s400, 1
        %s405 = smul.addr %s402, 2
        %s406 = sadd.s32 %s404, %s405
        %s407 = smul.addr %s406, 2
        %s408 = scalar_lea.vmem %s3, %s407
        %s409 = smul.u32 2, %s29
        %p410 = scmp.lt.s32.totalorder %s28, 1
        %s411 = scalar_select %p410, %s28, 1
        %s412 = smul.addr %s411, 4
        %s413 = smul.addr %s412, 8
        %s414 = scalar_lea.vmem %s4, %s413
        %p417 = scmp.eq.s32.totalorder %s29, 0
        // Predicated region
        $region61: #{tpu_custom_call.1} parent=51 // pred_check
          %p418 = pneg %p417
        $region62: #{tpu_custom_call.1} parent=51 // pred_check_branch
          %420 = sbr.rel (%p418) target = $region64
        $region63: #{tpu_custom_call.1} parent=51 // pred_region
          %421 = vst [vmem:[%s389] sm:$0xff] 0.0
        $region64: #{tpu_custom_call.1} parent=51 // pred_fallthru
          _
        %s422 = sld [smem:[#allocation2 + %s28]]
        %s423 = sld [smem:[#allocation5 + %s28]]
        %v424 = vld [vmem:[%s398] sm:$0xff]
        %v425 = vmul.f32 %v424, 2.0
        %v426 = vadd.f32 %v425, -1.0
        %v427 = vld [vmem:[%s408] sm:$0xf]
        %v428 = vunpack.c.l.bf16 %v427
        %v429 = vstv %s422
        %v430 = vmul.f32 %v426, %v429
        %v431 = vstv %s423
        %v432 = vmul.f32 %v428, %v431
        %v433 = vadd.f32 %v430, %v432
        %v434 = vld [vmem:[%s5] sm:$0xf]
        %v435 = vld [vmem:[%s5 + $0x4] sm:$0xf]
        %v436 = vld [vmem:[%s5 + $0x8] sm:$0xf]
        %v437 = vld [vmem:[%s5 + $0xc] sm:$0xf]
        %v439 = vcombine.high %v433, %v433
        %v441 = vpack.c.bf16 %v433, %v433
        %v442 = vpack.c.bf16 %v439, %v439
        %v443 = vld [vmem:[%s414] sm:$0xff]
        %v444 = vld [vmem:[%s414 + $0x8] sm:$0xff]
        %v445 = vld [vmem:[%s414 + $0x10] sm:$0xff]
        %v446 = vld [vmem:[%s414 + $0x18] sm:$0xff]
        %448 = vset.pattern.permute.xlu0 0
        %449 = vperm.xlu0 %448, %v443
        %v450 = vpop.permute.xlu0 %449
        %453 = vset.pattern.permute.xlu0 0
        %454 = vperm.xlu0 %453, %v444
        %v455 = vpop.permute.xlu0 %454
        %458 = vset.pattern.permute.xlu0 0
        %459 = vperm.xlu0 %458, %v445
        %v460 = vpop.permute.xlu0 %459
        %463 = vset.pattern.permute.xlu0 0
        %464 = vperm.xlu0 %463, %v446
        %v465 = vpop.permute.xlu0 %464
        %v471 = vunpack.c.l.b16 %v434
        %v472 = vunpack.c.l.b16 %v435
        %v473 = vunpack.c.l.b16 %v436
        %v474 = vunpack.c.l.b16 %v437
        %v475 = vpack.c.b16 %v472, %v471
        %v476 = vpack.c.b16 %v474, %v473
        %vm477 = vcmask 31744
        %v479 = vsel %vm477, %v475, 0
        %v482 = vsel %vm477, %v476, 0
        %vm484 = vcmask 1041408
        %v486 = vsel %vm484, %v441, 0
        %v489 = vsel %vm484, %v442, 0
        %491 = vmatprep.subr.bf16.mxu0 %v489
        %492 = vmatpush1.bf16.msra.mxu0 %v486
        %493 = vmatprep.subr.bf16.mxu0 0
        %494 = vmatpush1.bf16.msra.mxu0 0
        %495 = vmatprep.subr.bf16.mxu0 0
        %496 = vmatpush1.bf16.msra.mxu0 0
        %497 = vmatprep.subr.bf16.mxu0 0
        %498 = vmatpush1.bf16.msra.mxu0 0
        %499 = vmatprep.subr.bf16.mxu0 0
        %500 = vmatpush1.bf16.msra.mxu0 0
        %501 = vmatprep.subr.bf16.mxu0 0
        %502 = vmatpush1.bf16.msra.mxu0 0
        %503 = vmatprep.subr.bf16.mxu0 0
        %504 = vmatpush1.bf16.msra.mxu0 0
        %505 = vmatprep.subr.bf16.mxu0 0
        %506 = vmatpush1.bf16.msra.mxu0 0
        %507 = vmatprep.subr.bf16.mxu0 0
        %508 = vmatpush1.bf16.msra.mxu0 0
        %509 = vmatprep.subr.bf16.mxu0 0
        %510 = vmatpush1.bf16.msra.mxu0 0
        %511 = vmatprep.subr.bf16.mxu0 0
        %512 = vmatpush1.bf16.msra.mxu0 0
        %513 = vmatprep.subr.bf16.mxu0 0
        %514 = vmatpush1.bf16.msra.mxu0 0
        %515 = vmatprep.subr.bf16.mxu0 0
        %516 = vmatpush1.bf16.msra.mxu0 0
        %517 = vmatprep.subr.bf16.mxu0 0
        %518 = vmatpush1.bf16.msra.mxu0 0
        %519 = vmatprep.subr.bf16.mxu0 0
        %520 = vmatpush1.bf16.msra.mxu0 0
        %521 = vmatprep.subr.bf16.mxu0 0
        %522 = vmatpush1.bf16.msra.mxu0 0
        %523 = vmatprep.mubr.bf16.mxu0 0
        %524 = vmatmul.mubr.bf16.gmra.mrb[0].mxu0 %v479
        %v525 = vpop.f32.mrb[0].mxu0
        %v526 = vadd.f32 %v450, %v525
        %v527 = vpop.f32.mrb[0].mxu0
        %v528 = vadd.f32 %v450, %v527
        %v529 = vpop.f32.mrb[0].mxu0
        %v530 = vadd.f32 %v455, %v529
        %v531 = vpop.f32.mrb[0].mxu0
        %v532 = vadd.f32 %v455, %v531
        %533 = vmatprep.mubr.bf16.mxu0 0
        %534 = vmatmul.mubr.bf16.gmra.mrb[0].mxu0 %v482
        %v535 = vpop.f32.mrb[0].mxu0
        %v536 = vadd.f32 %v460, %v535
        %v537 = vpop.f32.mrb[0].mxu0
        %v538 = vadd.f32 %v460, %v537
        %v539 = vpop.f32.mrb[0].mxu0
        %v540 = vadd.f32 %v465, %v539
        %v541 = vpop.f32.mrb[0].mxu0
        %v542 = vadd.f32 %v465, %v541
        %543 = vdwg.mxu0
        %v544 = vpack.c.bf16 %v530, %v526
        %v545 = vpack.c.bf16 %v532, %v528
        %v546 = vpack.c.bf16 %v540, %v536
        %v547 = vpack.c.bf16 %v542, %v538
        %v548 = vxor.u32 %v544, 2147516416
        %v549 = vxor.u32 %v545, 2147516416
        %v550 = vxor.u32 %v546, 2147516416
        %v551 = vxor.u32 %v547, 2147516416
        %v553 = vmul.bf16 %v548, 1069105081
        %v554 = vpow.bf16.pop %v553
        %v556 = vmul.bf16 %v549, 1069105081
        %v557 = vpow.bf16.pop %v556
        %v559 = vmul.bf16 %v550, 1069105081
        %v560 = vpow.bf16.pop %v559
        %v562 = vmul.bf16 %v551, 1069105081
        %v563 = vpow.bf16.pop %v562
        %v564 = vadd.bf16 %v554, 1065369472
        %v565 = vadd.bf16 %v557, 1065369472
        %v566 = vadd.bf16 %v560, 1065369472
        %v567 = vadd.bf16 %v563, 1065369472
        %v568 = vrcp.bf16.pop %v564
        %v569 = vmul.bf16 1065369472, %v568
        %v570 = vrcp.bf16.pop %v565
        %v571 = vmul.bf16 1065369472, %v570
        %v572 = vrcp.bf16.pop %v566
        %v573 = vmul.bf16 1065369472, %v572
        %v574 = vrcp.bf16.pop %v567
        %v575 = vmul.bf16 1065369472, %v574
        %v576 = vmul.bf16 %v544, %v569
        %v577 = vmul.bf16 %v545, %v571
        %v578 = vmul.bf16 %v546, %v573
        %v579 = vmul.bf16 %v547, %v575
        %v580 = vld [vmem:[%s6] sm:$0x3]
        %v581 = vld [vmem:[%s7] sm:$0xf]
        %583 = vset.pattern.permute.xlu0 0
        %584 = vperm.xlu0 %583, %v581
        %v585 = vpop.permute.xlu0 %584
        %vm587 = vcmask 261120
        %v589 = vsel %vm587, %v580, 0
        %591 = vmatprep.subr.bf16.mxu0 %v577
        %592 = vmatpush1.bf16.msra.mxu0 %v576
        %593 = vmatprep.subr.bf16.mxu0 %v579
        %594 = vmatpush1.bf16.msra.mxu0 %v578
        %595 = vmatprep.subr.bf16.mxu0 0
        %596 = vmatpush1.bf16.msra.mxu0 0
        %597 = vmatprep.subr.bf16.mxu0 0
        %598 = vmatpush1.bf16.msra.mxu0 0
        %599 = vmatprep.subr.bf16.mxu0 0
        %600 = vmatpush1.bf16.msra.mxu0 0
        %601 = vmatprep.subr.bf16.mxu0 0
        %602 = vmatpush1.bf16.msra.mxu0 0
        %603 = vmatprep.subr.bf16.mxu0 0
        %604 = vmatpush1.bf16.msra.mxu0 0
        %605 = vmatprep.subr.bf16.mxu0 0
        %606 = vmatpush1.bf16.msra.mxu0 0
        %607 = vmatprep.subr.bf16.mxu0 0
        %608 = vmatpush1.bf16.msra.mxu0 0
        %609 = vmatprep.subr.bf16.mxu0 0
        %610 = vmatpush1.bf16.msra.mxu0 0
        %611 = vmatprep.subr.bf16.mxu0 0
        %612 = vmatpush1.bf16.msra.mxu0 0
        %613 = vmatprep.subr.bf16.mxu0 0
        %614 = vmatpush1.bf16.msra.mxu0 0
        %615 = vmatprep.subr.bf16.mxu0 0
        %616 = vmatpush1.bf16.msra.mxu0 0
        %617 = vmatprep.subr.bf16.mxu0 0
        %618 = vmatpush1.bf16.msra.mxu0 0
        %619 = vmatprep.subr.bf16.mxu0 0
        %620 = vmatpush1.bf16.msra.mxu0 0
        %621 = vmatprep.subr.bf16.mxu0 0
        %622 = vmatpush1.bf16.msra.mxu0 0
        %623 = vmatprep.mubr.bf16.mxu0 0
        %624 = vmatmul.mubr.bf16.gmra.mrb[0].mxu0 %v589
        %v625 = vpop.f32.mrb[0].mxu0
        %v626 = vadd.f32 %v585, %v625
        %v627 = vpop.f32.mrb[0].mxu0
        %v628 = vadd.f32 %v585, %v627
        %v629 = vpop.f32.mrb[0].mxu0
        %v630 = vpop.f32.mrb[0].mxu0
        %631 = vdwg.mxu0
        %v633 = vcombine.high %v428, %v428
        %v635 = vsub.f32 %v626, %v428
        %v636 = vsub.f32 %v628, %v633
        %v637 = vld [vmem:[%s389] sm:$0xff]
        %v638 = vmul.f32 %v635, %v635
        %v639 = vmul.f32 %v636, %v636
        %vm640 = vcmask 1043456
        %v641 = vsel %vm640, %v638, 0.0
        %v642 = vsel %vm640, %v639, 0.0
        %v643 = vadd.f32 %v641, %v642
        %644 = vadd.xlane.f32.xlu0 %v643
        %v645 = vpop.xlane.xlu0 %644
        %v646 = vrot.slane %v645, 4
        %v647 = vadd.f32 %v645, %v646
        %v648 = vrot.slane %v647, 2
        %v649 = vadd.f32 %v647, %v648
        %v650 = vrot.slane %v649, 1
        %v651 = vadd.f32 %v649, %v650
        %s652 = vtos %v651
        %v653 = vstv %s652
        %v654 = vadd.f32 %v637, %v653
        %655 = vst [vmem:[%s389] sm:$0xff] %v654
        %s656 = sand.u32 %s231, 1
        %s657 = scalar_lea.sflag [#allocation3], %s656
        %s658 = sand.u32 %s231, 1
        %s659 = smul.addr %s658, 8
        %s660 = scalar_lea.vmem [#allocation7], %s659
        // Predicated region
        $region65: #{tpu_custom_call.1} parent=51 // pred_check
          %p661 = pneg %p241
        $region66: #{tpu_custom_call.1} parent=51 // pred_check_branch
          %663 = sbr.rel (%p661) target = $region68
        $region67: #{tpu_custom_call.1} parent=51 // pred_region
          %s665 = ssub.s32 128, 128
          %666 = vsyncadd %s657, %s665
          %s667 = smul.addr %s28, 128
          %s668 = scalar_lea.hbm %s8, %s667
          %s670 = sshll.u32 %s660, 4
          %s671 = int_to_ptr.vmem [resolvable:$true] %s670
          %673 = dma.vmem_to_hbm [thread:$0]  %s671, 128, %s668, %s657
        $region68: #{tpu_custom_call.1} parent=51 // pred_fallthru
          _
      $region52: #{tpu_custom_call.1} parent=5 // pred_fallthru
        _
      %p674 = scmp.le.s32.totalorder 2, %s19
      // Predicated region
      $region69: #{tpu_custom_call.1} parent=5 // pred_check
        %p675 = pneg %p674
      $region70: #{tpu_custom_call.1} parent=5 // pred_check_branch
        %677 = sbr.rel (%p675) target = $region72
      $region71: #{tpu_custom_call.1} parent=5 // pred_region
        %s678 = ssub.s32 %s19, 2
        // Predicated region
        $region73: #{tpu_custom_call.1} parent=71 // pred_check
          %p679 = pneg %p247
        $region74: #{tpu_custom_call.1} parent=71 // pred_check_branch
          %681 = sbr.rel (%p679) target = $region76
        $region75: #{tpu_custom_call.1} parent=71 // pred_region
          %s682 = sand.u32 %s232, 1
          %s683 = scalar_lea.sflag [#allocation3], %s682
          %s684 = sand.u32 %s232, 1
          %s685 = smul.addr %s684, 8
          %s686 = scalar_lea.vmem [#allocation7], %s685
          %687 = dma.done %s683, 128
        $region76: #{tpu_custom_call.1} parent=71 // pred_fallthru
          _
      $region72: #{tpu_custom_call.1} parent=5 // pred_fallthru
        _
    $region6: #{tpu_custom_call.1} parent=1 // loop_footer
      %s23 = sadd.s32 1, %s19
    $region7: #{tpu_custom_call.1} parent=1 // loop_footer_branch
      %18 = sbr.rel target = $region3
    $region8: #{tpu_custom_call.1} parent=1 // loop_exit
      _
    %688 = vsyncpa [#allocation3], 1
    %s689 = scalar_lea.sflag [#allocation3], 1
    %690 = vsyncpa %s689, 1
    %691 = vsyncpa [#allocation4], 1
    %s692 = scalar_lea.sflag [#allocation4], 1
    %693 = vsyncpa %s692, 1
    %694 = vsyncpa [#allocation6], 1

</llo_original>
